<compile_context>
chip_gen: v5e
topology: v5e:2x2
jax: 0.10.0
libtpu: 0.0.40
codegen_flags: <defaults>
</compile_context>

<pallas_src>
import functools

import jax
import jax.numpy as jnp
from jax.experimental import pallas as pl
from jax.experimental.pallas import tpu as pltpu

KH = KW = 4
STRIDE = 2
PAD = 1
BN_EPS = 1e-5
LRELU_SLOPE = 0.2
LANES = 128


def _round_up(x, m):
    return (x + m - 1) // m * m


def _pick_vmem_limit(request_bytes):
    cap = 48 * 1024 * 1024                       # safe ceiling on v5e/v6e/v7x
    try:
        cap = int(pltpu.get_tpu_info().vmem_capacity_bytes * 3 // 4)
    except Exception:
        pass
    return max(32 * 1024 * 1024, min(int(request_bytes), cap))


# ---------------------------------------------------------------------------
# Shared conv body: 4x4 / stride-2 conv of one image (one Cout tile) as four
# shifted MXU matmuls with f32 accumulation.  Weight is VMEM-resident.
# ---------------------------------------------------------------------------
def _conv_acc(xs_ref, w_ref, *, wo1, c_tile, s_out_pad):
    # xs_ref: [1, C4, S_in_pad] bf16 (channel-major phase-split input)
    # w_ref : [4, C_pad, C4]    bf16 (full weight, resident; slice per tile)
    ci = pl.program_id(1)
    c0 = pl.multiple_of(ci * c_tile, c_tile)
    acc = jnp.zeros((c_tile, s_out_pad), jnp.float32)
    for dy in range(2):
        for dx in range(2):
            wk = w_ref[2 * dy + dx, pl.ds(c0, c_tile), :]        # [c_tile, C4]
            xk = xs_ref[0, :, pl.ds(dy * wo1 + dx, s_out_pad)]   # [C4, S]
            acc = acc + jnp.dot(wk, xk, preferred_element_type=jnp.float32)
    return acc


# Pass 1: per-image / per-Cout-tile BN partial statistics (sum, sum of sq).
def _conv_stats_kernel(xs_ref, w_ref, mask_ref, stats_ref, *,
                       wo1, c_tile, s_out_pad):
    acc = _conv_acc(xs_ref, w_ref, wo1=wo1, c_tile=c_tile, s_out_pad=s_out_pad)
    acc = acc * mask_ref[...]             # zero garbage columns / align padding
    stats_ref[0, :, 0:1] = jnp.sum(acc, axis=1, keepdims=True)
    stats_ref[0, :, 1:2] = jnp.sum(acc * acc, axis=1, keepdims=True)


# Pass 2: recompute conv, apply folded BN scale/shift + LeakyReLU(0.2).
def _conv_bn_lrelu_kernel(xs_ref, w_ref, scale_ref, shift_ref, out_ref, *,
                          wo1, c_tile, s_out_pad):
    acc = _conv_acc(xs_ref, w_ref, wo1=wo1, c_tile=c_tile, s_out_pad=s_out_pad)
    z = acc * scale_ref[...] + shift_ref[...]     # [c_tile, 1] bcast over lanes
    out_ref[0] = jnp.where(z >= 0, z, LRELU_SLOPE * z)


def downsample_block(x, weight, gamma, beta, *, batch_norm=True):
    """x: [N, Cin, H, W] NCHW.  weight: [Cout, Cin, 4, 4] (PyTorch OIHW).
    Returns [N, Cout, Ho, Wo] NCHW float32 = LeakyReLU(BN(Conv(x)))."""
    n, cin, h, w_in = x.shape
    cout = weight.shape[0]
    ho = (h + 2 * PAD - KH) // STRIDE + 1
    wo = (w_in + 2 * PAD - KW) // STRIDE + 1
    wo1 = wo + 1
    c4 = 4 * cin

    c_pad = _round_up(cout, LANES)
    c_tile = 256 if c_pad % 256 == 0 else 128     # 256-wide tiles for big Cout
    num_c = c_pad // c_tile

    s_out = ho * wo1                              # flat spatial (one garbage
    s_out_pad = _round_up(s_out, LANES)           #  column per output row)
    s_in = (ho + 1) * wo1
    s_in_pad = _round_up(s_out_pad + wo1 + 2, LANES)

    # --- host prep (single cheap pass): pad, phase-split, channel-major bf16 -
    hp, wp = 2 * ho + 2, 2 * wo + 2
    xp = jnp.pad(x.astype(jnp.bfloat16),
                 ((0, 0), (0, 0), (PAD, hp - h - PAD), (PAD, wp - w_in - PAD)))
    xs = xp.reshape(n, cin, ho + 1, 2, wo1, 2)        # [n, ci, i, py, j, px]
    xs = jnp.transpose(xs, (0, 3, 5, 1, 2, 4))        # [n, py, px, ci, i, j]
    xs = xs.reshape(n, c4, s_in)
    xs = jnp.pad(xs, ((0, 0), (0, 0), (0, s_in_pad - s_in)))

    # weight -> [dy*2+dx, C_pad, (py, px, cin)] bf16 (matches xs channel order)
    wr = weight.astype(jnp.bfloat16).reshape(cout, cin, 2, 2, 2, 2)
    wr = jnp.transpose(wr, (2, 4, 0, 3, 5, 1))        # [dy, dx, co, py, px, ci]
    w2 = jnp.pad(wr.reshape(4, cout, c4), ((0, 0), (0, c_pad - cout), (0, 0)))

    # validity mask over the flat spatial axis (drops garbage col + alignment)
    pos = jnp.arange(s_out_pad)
    mask = ((pos < s_out) & ((pos % wo1) < wo)).astype(jnp.float32)
    mask = mask.reshape(1, s_out_pad)

    xs_spec = pl.BlockSpec((1, c4, s_in_pad), lambda i, j: (i, 0, 0))
    w_spec = pl.BlockSpec((4, c_pad, c4), lambda i, j: (0, 0, 0))  # resident

    vmem_req = (2 * c4 * s_in_pad * 2 + 4 * c_pad * c4 * 2
                + 3 * c_tile * s_out_pad * 4 + 8 * s_out_pad * 4 + (4 << 20))
    cparams = pltpu.CompilerParams(
        dimension_semantics=("parallel", "parallel"),
        vmem_limit_bytes=_pick_vmem_limit(2 * vmem_req))

    if batch_norm:
        # ---------------- pass 1: conv -> partial BN stats only -------------
        stats = pl.pallas_call(
            functools.partial(_conv_stats_kernel, wo1=wo1, c_tile=c_tile,
                              s_out_pad=s_out_pad),
            out_shape=jax.ShapeDtypeStruct((n, c_pad, 2), jnp.float32),
            grid_spec=pltpu.PrefetchScalarGridSpec(
                num_scalar_prefetch=0,
                grid=(n, num_c),
                in_specs=[xs_spec, w_spec,
                          pl.BlockSpec((1, s_out_pad), lambda i, j: (0, 0))],
                out_specs=pl.BlockSpec((1, c_tile, 2),
                                       lambda i, j: (i, j, 0))),
            compiler_params=cparams,
            cost_estimate=pl.CostEstimate(
                flops=8 * n * c_pad * c4 * s_out_pad,
                transcendentals=0,
                bytes_accessed=(n * c4 * s_in_pad * 2 + 4 * c_pad * c4 * 2
                                + n * c_pad * 2 * 4)),
        )(xs, w2, mask)

        count = jnp.float32(n * ho * wo)              # true element count
        tot = jnp.sum(stats, axis=0)                  # [C_pad, 2]
        mean = tot[:, 0] / count
        var = jnp.maximum(tot[:, 1] / count - mean * mean, 0.0)  # biased var
        inv = jax.lax.rsqrt(var + BN_EPS)
        g = jnp.pad(gamma.astype(jnp.float32), (0, c_pad - cout),
                    constant_values=1.0)
        b = jnp.pad(beta.astype(jnp.float32), (0, c_pad - cout))
        scale = (g * inv).reshape(c_pad, 1)
        shift = (b - mean * g * inv).reshape(c_pad, 1)
    else:
        scale = jnp.ones((c_pad, 1), jnp.float32)
        shift = jnp.zeros((c_pad, 1), jnp.float32)

    # ---------------- pass 2: conv -> BN apply -> LeakyReLU ------------------
    out_cm = pl.pallas_call(
        functools.partial(_conv_bn_lrelu_kernel, wo1=wo1, c_tile=c_tile,
                          s_out_pad=s_out_pad),
        out_shape=jax.ShapeDtypeStruct((n, c_pad, s_out_pad), jnp.float32),
        grid_spec=pltpu.PrefetchScalarGridSpec(
            num_scalar_prefetch=0,
            grid=(n, num_c),
            in_specs=[xs_spec, w_spec,
                      pl.BlockSpec((c_tile, 1), lambda i, j: (j, 0)),
                      pl.BlockSpec((c_tile, 1), lambda i, j: (j, 0))],
            out_specs=pl.BlockSpec((1, c_tile, s_out_pad),
                                   lambda i, j: (i, j, 0))),
        compiler_params=cparams,
        cost_estimate=pl.CostEstimate(
            flops=8 * n * c_pad * c4 * s_out_pad,
            transcendentals=0,
            bytes_accessed=(n * c4 * s_in_pad * 2 + 4 * c_pad * c4 * 2
                            + n * c_pad * s_out_pad * 4)),
    )(xs, w2, scale, shift)

    # C-major -> NCHW: drop padded channels, the per-row garbage column and
    # the 128-alignment tail.  Nearly-contiguous copy, no big transpose pass.
    out = out_cm[:, :cout, :s_out].reshape(n, cout, ho, wo1)[:, :, :, :wo]
    return out


def reference(x, weight, gamma, beta):
    """Pure-JAX reference (lax conv + batch-stat BN + leaky relu)."""
    y = jax.lax.conv_general_dilated(
        x.astype(jnp.float32),
        weight.astype(jnp.float32),
        window_strides=(STRIDE, STRIDE),
        padding=((PAD, PAD), (PAD, PAD)),
        dimension_numbers=("NCHW", "OIHW", "NCHW"),
    )
    mean = jnp.mean(y, axis=(0, 2, 3), keepdims=True)
    var = jnp.mean((y - mean) ** 2, axis=(0, 2, 3), keepdims=True)
    yh = (y - mean) * jax.lax.rsqrt(var + BN_EPS)
    yh = yh * gamma.reshape(1, -1, 1, 1) + beta.reshape(1, -1, 1, 1)
    return jnp.where(yh >= 0, yh, LRELU_SLOPE * yh)


if __name__ == "__main__":
    key = jax.random.PRNGKey(0)
    k_x, k_w = jax.random.split(key)

    N, Cin, H, W = 2, 4, 16, 16
    Cout = 8

    x = jax.random.normal(k_x, (N, Cin, H, W), dtype=jnp.float32)
    weight = 0.1 * jax.random.normal(k_w, (Cout, Cin, KH, KW), dtype=jnp.float32)
    gamma = jnp.ones((Cout,), dtype=jnp.float32)   # fresh BatchNorm2d params
    beta = jnp.zeros((Cout,), dtype=jnp.float32)

    out = jax.block_until_ready(downsample_block(x, weight, gamma, beta))

    # Reference on bf16-rounded inputs (kernel feeds bf16 operands to the MXU;
    # all accumulation / BN math stays in f32 on both paths -> tight match).
    xq = x.astype(jnp.bfloat16).astype(jnp.float32)
    wq = weight.astype(jnp.bfloat16).astype(jnp.float32)
    ref = jax.block_until_ready(reference(xq, wq, gamma, beta))

    assert out.shape == (N, Cout, H // 2, W // 2), out.shape
    err = float(jnp.max(jnp.abs(out - ref)))
    assert jnp.allclose(out, ref, atol=2e-3, rtol=2e-3), err
    print("KERNEL_OK")
</pallas_src>

<mosaic_0001>
module attributes {stable_mosaic.version = 11 : i64} {
  func.func @_conv_stats_kernel(%arg0: i32, %arg1: i32, %arg2: memref<1x16x256xbf16, #tpu.memory_space<vmem>>, %arg3: memref<4x128x16xbf16, #tpu.memory_space<vmem>>, %arg4: memref<1x128xf32, #tpu.memory_space<vmem>>, %arg5: memref<1x128x2xf32, #tpu.memory_space<vmem>>) attributes {dimension_semantics = [#tpu.dimension_semantics<parallel>, #tpu.dimension_semantics<parallel>], iteration_bounds = array<i64: 2, 1>, scalar_prefetch = 0 : i64, scratch_operands = 0 : i64, tpu.core_type = #tpu.core_type<tc>, window_params = [{transform_indices = @transform_0, window_bounds = array<i64: 1, 16, 256>}, {pipeline_mode = #tpu.pipeline_mode<synchronous>, transform_indices = @transform_1, window_bounds = array<i64: 4, 128, 16>}, {pipeline_mode = #tpu.pipeline_mode<synchronous>, transform_indices = @transform_2, window_bounds = array<i64: 1, 128>}, {transform_indices = @transform_3, window_bounds = array<i64: 1, 128, 2>}]} {
    %c128_i32 = arith.constant 128 : i32
    %0 = arith.muli %arg1, %c128_i32 : i32
    %1 = tpu.assume_multiple %0, 128 : i32
    %cst = arith.constant 0.000000e+00 : f32
    %2 = vector.broadcast %cst : f32 to vector<128x128xf32>
    %c0 = arith.constant 0 : index
    %3 = arith.index_cast %1 : i32 to index
    %c0_0 = arith.constant 0 : index
    %4 = vector.load %arg3[%c0, %3, %c0_0] : memref<4x128x16xbf16, #tpu.memory_space<vmem>>, vector<1x128x16xbf16>
    %5 = vector.shape_cast %4 : vector<1x128x16xbf16> to vector<128x16xbf16>
    %c0_1 = arith.constant 0 : index
    %c0_2 = arith.constant 0 : index
    %c0_3 = arith.constant 0 : index
    %6 = vector.load %arg2[%c0_1, %c0_2, %c0_3] : memref<1x16x256xbf16, #tpu.memory_space<vmem>>, vector<1x16x128xbf16>
    %7 = vector.shape_cast %6 : vector<1x16x128xbf16> to vector<16x128xbf16>
    %cst_4 = arith.constant dense<0.000000e+00> : vector<128x128xf32>
    %8 = tpu.matmul %5, %7, %cst_4 {dimension_numbers = #tpu.dot_dimension_numbers<[1], [0], [0], [1], [0, 0, 1, 1], [], []>} : vector<128x16xbf16>, vector<16x128xbf16>, vector<128x128xf32> -> vector<128x128xf32>
    %9 = arith.addf %2, %8 : vector<128x128xf32>
    %c1 = arith.constant 1 : index
    %10 = arith.index_cast %1 : i32 to index
    %c0_5 = arith.constant 0 : index
    %11 = vector.load %arg3[%c1, %10, %c0_5] : memref<4x128x16xbf16, #tpu.memory_space<vmem>>, vector<1x128x16xbf16>
    %12 = vector.shape_cast %11 : vector<1x128x16xbf16> to vector<128x16xbf16>
    %c0_6 = arith.constant 0 : index
    %c0_7 = arith.constant 0 : index
    %c1_8 = arith.constant 1 : index
    %13 = vector.load %arg2[%c0_6, %c0_7, %c1_8] : memref<1x16x256xbf16, #tpu.memory_space<vmem>>, vector<1x16x128xbf16>
    %14 = vector.shape_cast %13 : vector<1x16x128xbf16> to vector<16x128xbf16>
    %cst_9 = arith.constant dense<0.000000e+00> : vector<128x128xf32>
    %15 = tpu.matmul %12, %14, %cst_9 {dimension_numbers = #tpu.dot_dimension_numbers<[1], [0], [0], [1], [0, 0, 1, 1], [], []>} : vector<128x16xbf16>, vector<16x128xbf16>, vector<128x128xf32> -> vector<128x128xf32>
    %16 = arith.addf %9, %15 : vector<128x128xf32>
    %c2 = arith.constant 2 : index
    %17 = arith.index_cast %1 : i32 to index
    %c0_10 = arith.constant 0 : index
    %18 = vector.load %arg3[%c2, %17, %c0_10] : memref<4x128x16xbf16, #tpu.memory_space<vmem>>, vector<1x128x16xbf16>
    %19 = vector.shape_cast %18 : vector<1x128x16xbf16> to vector<128x16xbf16>
    %c0_11 = arith.constant 0 : index
    %c0_12 = arith.constant 0 : index
    %c9 = arith.constant 9 : index
    %20 = vector.load %arg2[%c0_11, %c0_12, %c9] : memref<1x16x256xbf16, #tpu.memory_space<vmem>>, vector<1x16x128xbf16>
    %21 = vector.shape_cast %20 : vector<1x16x128xbf16> to vector<16x128xbf16>
    %cst_13 = arith.constant dense<0.000000e+00> : vector<128x128xf32>
    %22 = tpu.matmul %19, %21, %cst_13 {dimension_numbers = #tpu.dot_dimension_numbers<[1], [0], [0], [1], [0, 0, 1, 1], [], []>} : vector<128x16xbf16>, vector<16x128xbf16>, vector<128x128xf32> -> vector<128x128xf32>
    %23 = arith.addf %16, %22 : vector<128x128xf32>
    %c3 = arith.constant 3 : index
    %24 = arith.index_cast %1 : i32 to index
    %c0_14 = arith.constant 0 : index
    %25 = vector.load %arg3[%c3, %24, %c0_14] : memref<4x128x16xbf16, #tpu.memory_space<vmem>>, vector<1x128x16xbf16>
    %26 = vector.shape_cast %25 : vector<1x128x16xbf16> to vector<128x16xbf16>
    %c0_15 = arith.constant 0 : index
    %c0_16 = arith.constant 0 : index
    %c10 = arith.constant 10 : index
    %27 = vector.load %arg2[%c0_15, %c0_16, %c10] : memref<1x16x256xbf16, #tpu.memory_space<vmem>>, vector<1x16x128xbf16>
    %28 = vector.shape_cast %27 : vector<1x16x128xbf16> to vector<16x128xbf16>
    %cst_17 = arith.constant dense<0.000000e+00> : vector<128x128xf32>
    %29 = tpu.matmul %26, %28, %cst_17 {dimension_numbers = #tpu.dot_dimension_numbers<[1], [0], [0], [1], [0, 0, 1, 1], [], []>} : vector<128x16xbf16>, vector<16x128xbf16>, vector<128x128xf32> -> vector<128x128xf32>
    %30 = arith.addf %23, %29 : vector<128x128xf32>
    %c0_18 = arith.constant 0 : index
    %c0_19 = arith.constant 0 : index
    %31 = vector.load %arg4[%c0_18, %c0_19] : memref<1x128xf32, #tpu.memory_space<vmem>>, vector<1x128xf32>
    %32 = vector.broadcast %31 : vector<1x128xf32> to vector<128x128xf32>
    %33 = arith.mulf %30, %32 : vector<128x128xf32>
    %cst_20 = arith.constant dense<0.000000e+00> : vector<128xf32>
    %34 = vector.multi_reduction <add>, %33, %cst_20 [1] : vector<128x128xf32> to vector<128xf32>
    %35 = vector.shape_cast %34 : vector<128xf32> to vector<128x1xf32>
    %c0_21 = arith.constant 0 : index
    %c0_22 = arith.constant 0 : index
    %c0_23 = arith.constant 0 : index
    %36 = vector.load %arg5[%c0_21, %c0_22, %c0_23] : memref<1x128x2xf32, #tpu.memory_space<vmem>>, vector<1x128x1xf32>
    %37 = vector.shape_cast %36 : vector<1x128x1xf32> to vector<128x1xf32>
    %38 = vector.shape_cast %35 : vector<128x1xf32> to vector<1x128x1xf32>
    tpu.vector_store %arg5[%c0_21, %c0_22, %c0_23], %38 {strides = array<i32>} : memref<1x128x2xf32, #tpu.memory_space<vmem>>, vector<1x128x1xf32>,
    %39 = arith.mulf %33, %33 : vector<128x128xf32>
    %cst_24 = arith.constant dense<0.000000e+00> : vector<128xf32>
    %40 = vector.multi_reduction <add>, %39, %cst_24 [1] : vector<128x128xf32> to vector<128xf32>
    %41 = vector.shape_cast %40 : vector<128xf32> to vector<128x1xf32>
    %c0_25 = arith.constant 0 : index
    %c0_26 = arith.constant 0 : index
    %c1_27 = arith.constant 1 : index
    %42 = vector.load %arg5[%c0_25, %c0_26, %c1_27] : memref<1x128x2xf32, #tpu.memory_space<vmem>>, vector<1x128x1xf32>
    %43 = vector.shape_cast %42 : vector<1x128x1xf32> to vector<128x1xf32>
    %44 = vector.shape_cast %41 : vector<128x1xf32> to vector<1x128x1xf32>
    tpu.vector_store %arg5[%c0_25, %c0_26, %c1_27], %44 {strides = array<i32>} : memref<1x128x2xf32, #tpu.memory_space<vmem>>, vector<1x128x1xf32>,
    return
  }
  func.func @transform_0(%arg0: i32, %arg1: i32) -> (i32, i32, i32) {
    %c0_i32 = arith.constant 0 : i32
    %c0_i32_0 = arith.constant 0 : i32
    %c0_i32_1 = arith.constant 0 : i32
    return %arg0, %c0_i32, %c0_i32_0 : i32, i32, i32
  }
  func.func @transform_1(%arg0: i32, %arg1: i32) -> (i32, i32, i32) {
    %c0_i32 = arith.constant 0 : i32
    %c0_i32_0 = arith.constant 0 : i32
    %c0_i32_1 = arith.constant 0 : i32
    %c0_i32_2 = arith.constant 0 : i32
    return %c0_i32, %c0_i32_0, %c0_i32_1 : i32, i32, i32
  }
  func.func @transform_2(%arg0: i32, %arg1: i32) -> (i32, i32) {
    %c0_i32 = arith.constant 0 : i32
    %c0_i32_0 = arith.constant 0 : i32
    %c0_i32_1 = arith.constant 0 : i32
    return %c0_i32, %c0_i32_0 : i32, i32
  }
  func.func @transform_3(%arg0: i32, %arg1: i32) -> (i32, i32, i32) {
    %c0_i32 = arith.constant 0 : i32
    %c0_i32_0 = arith.constant 0 : i32
    return %arg0, %arg1, %c0_i32 : i32, i32, i32
  }
}

</mosaic_0001>

<llo_original>
// kernel: tpu_custom_call.1
$region0: #{tpu_custom_call.1}
  #allocation0 [shape = 'u32[]', space=smem, size = 0x4, offset = 0x4, fixed_abs, tag = 'smem constant byte address 0x4 - core index']
  #allocation1 [shape = 'u32[72,128]{1,0:T(1,128)}', space=vmem, size = 0x9000, scoped, tag = 'internal scratch']
  %s0 = inlined_call_operand.vmem [shape: bf16[2,16,256], index: 0, kind: input, shape index: {}]
  %s1 = inlined_call_operand.vmem [shape: bf16[4,128,16], index: 1, kind: input, shape index: {}]
  %s2 = inlined_call_operand.vmem [shape: f32[1,128], index: 2, kind: input, shape index: {}]
  %s3 = inlined_call_operand.vmem [shape: f32[2,128,2], index: 3, kind: output, shape index: {}]
  %s4 = sld [smem:[#allocation0]]
  $region45: #{tpu_custom_call.1} parent=0
    _
  %s6 = ssub.s32 1, %s4
  %s7 = scalar_select 0, %s6, %s4
  loop: start=0, step=1, limit=4
  $region2: #{tpu_custom_call.1} parent=0 // loop_pre_header
    _
  $region3: #{tpu_custom_call.1} parent=0 // loop_header
    %s9 = sphi 0, %s13
    %p10 = scmp.ge.s32.totalorder %s9, 4
    %s16 = sphi 0, %s28
    %s17 = sphi 0, %s24
    %s18 = sphi 0, %s16
    %s19 = sphi 0, %s17
    %s20 = sphi 0, %s18
    %s21 = sphi 0, %s19
    %s31 = sphi 0, %s33
    %s34 = sphi 0, %s31
    %s35 = sphi 0, %s34
    %s51 = sphi 0, %s35
    %s55 = sphi 0, %s55
    %s57 = sphi 0, %s55
    %s58 = sphi 0, %s57
    %s72 = sphi 0, %s58
    %s76 = sphi 0, %s76
    %s78 = sphi 0, %s76
    %s79 = sphi 0, %s78
    %s93 = sphi 0, %s79
    %s101 = sphi 0, %s103
    %s104 = sphi 0, %s101
    %s105 = sphi 0, %s104
    %s121 = sphi 0, %s105
  $region4: #{tpu_custom_call.1} parent=0 // loop_header_branch
    %12 = sbr.rel (%p10) target = $region8
  $region5: #{tpu_custom_call.1} parent=0 // loop_body
    %s14 = ssub.s32 %s9, 1
    %s15 = ssub.s32 %s9, 2
    %s22 = sadd.s32 1, %s17
    %p23 = scmp.ge.s32.totalorder %s22, 1
    %s24 = scalar_select %p23, 0, %s22
    %s25 = sadd.s32 1, %s16
    %s26 = scalar_select %p23, %s25, %s16
    %p27 = scmp.ge.s32.totalorder %s26, 2
    %s28 = scalar_select %p27, 0, %s26
    %s29 = ssub.s32 %s16, %s28
    %p30 = scmp.eq.s32.totalorder %s29, 0
    %s32 = sadd.s32 %s31, 1
    %s33 = scalar_select %p30, %s31, %s32
    %p36 = pneg %p30
    %p37 = scmp.eq.s32.totalorder %s9, 1
    %p38 = por %p36, %p37
    %p39 = scmp.ne.s32.totalorder %s31, %s34
    %p40 = scmp.eq.s32.totalorder %s9, 0
    %p41 = por %p39, %p40
    %p42 = scmp.ne.s32.totalorder %s31, %s34
    %p43 = scmp.eq.s32.totalorder %s14, 1
    %p44 = por %p42, %p43
    %p45 = scmp.ne.s32.totalorder %s34, %s35
    %p46 = scmp.eq.s32.totalorder %s14, 0
    %p47 = por %p45, %p46
    %p48 = scmp.ne.s32.totalorder %s34, %s35
    %p49 = scmp.eq.s32.totalorder %s15, 1
    %p50 = por %p48, %p49
    %p52 = scmp.ne.s32.totalorder %s35, %s51
    %p53 = scmp.eq.s32.totalorder %s15, 0
    %p54 = por %p52, %p53
    %s56 = sadd.s32 %s55, 1
    %p59 = scmp.eq.s32.totalorder %s9, 1
    %p60 = scmp.ne.s32.totalorder %s55, %s57
    %p61 = scmp.eq.s32.totalorder %s9, 0
    %p62 = por %p60, %p61
    %p63 = scmp.ne.s32.totalorder %s55, %s57
    %p64 = scmp.eq.s32.totalorder %s14, 1
    %p65 = por %p63, %p64
    %p66 = scmp.ne.s32.totalorder %s57, %s58
    %p67 = scmp.eq.s32.totalorder %s14, 0
    %p68 = por %p66, %p67
    %p69 = scmp.ne.s32.totalorder %s57, %s58
    %p70 = scmp.eq.s32.totalorder %s15, 1
    %p71 = por %p69, %p70
    %p73 = scmp.ne.s32.totalorder %s58, %s72
    %p74 = scmp.eq.s32.totalorder %s15, 0
    %p75 = por %p73, %p74
    %s77 = sadd.s32 %s76, 1
    %p80 = scmp.eq.s32.totalorder %s9, 1
    %p81 = scmp.ne.s32.totalorder %s76, %s78
    %p82 = scmp.eq.s32.totalorder %s9, 0
    %p83 = por %p81, %p82
    %p84 = scmp.ne.s32.totalorder %s76, %s78
    %p85 = scmp.eq.s32.totalorder %s14, 1
    %p86 = por %p84, %p85
    %p87 = scmp.ne.s32.totalorder %s78, %s79
    %p88 = scmp.eq.s32.totalorder %s14, 0
    %p89 = por %p87, %p88
    %p90 = scmp.ne.s32.totalorder %s78, %s79
    %p91 = scmp.eq.s32.totalorder %s15, 1
    %p92 = por %p90, %p91
    %p94 = scmp.ne.s32.totalorder %s79, %s93
    %p95 = scmp.eq.s32.totalorder %s15, 0
    %p96 = por %p94, %p95
    %s97 = ssub.s32 %s16, %s28
    %s98 = ssub.s32 %s17, %s24
    %s99 = sor.u32 %s97, %s98
    %p100 = scmp.eq.s32.totalorder %s99, 0
    %s102 = sadd.s32 %s101, 1
    %s103 = scalar_select %p100, %s101, %s102
    %p106 = pneg %p100
    %p107 = scmp.eq.s32.totalorder %s9, 1
    %p108 = por %p106, %p107
    %p109 = scmp.ne.s32.totalorder %s101, %s104
    %p110 = scmp.eq.s32.totalorder %s9, 0
    %p111 = por %p109, %p110
    %p112 = scmp.ne.s32.totalorder %s101, %s104
    %p113 = scmp.eq.s32.totalorder %s14, 1
    %p114 = por %p112, %p113
    %p115 = scmp.ne.s32.totalorder %s104, %s105
    %p116 = scmp.eq.s32.totalorder %s14, 0
    %p117 = por %p115, %p116
    %p118 = scmp.ne.s32.totalorder %s104, %s105
    %p119 = scmp.eq.s32.totalorder %s15, 1
    %p120 = por %p118, %p119
    %p122 = scmp.ne.s32.totalorder %s105, %s121
    %p123 = scmp.eq.s32.totalorder %s15, 0
    %p124 = por %p122, %p123
    %p125 = scmp.le.s32.totalorder 1, %s9
    %p126 = scmp.lt.s32.totalorder %s9, 3
    %p127 = pnand %p125, %p126
    %p128 = pneg %p127
    // Predicated region
    $region9: #{tpu_custom_call.1} parent=5 // pred_check
      _
    $region10: #{tpu_custom_call.1} parent=5 // pred_check_branch
      %130 = sbr.rel (%p127) target = $region12
    $region11: #{tpu_custom_call.1} parent=5 // pred_region
      %s131 = ssub.s32 %s9, 1
      // Predicated region
      $region13: #{tpu_custom_call.1} parent=11 // pred_check
        %p132 = pneg %p68
      $region14: #{tpu_custom_call.1} parent=11 // pred_check_branch
        %134 = sbr.rel (%p132) target = $region16
      $region15: #{tpu_custom_call.1} parent=11 // pred_region
        _
      $region16: #{tpu_custom_call.1} parent=11 // pred_fallthru
        _
      // Predicated region
      $region17: #{tpu_custom_call.1} parent=11 // pred_check
        %p135 = pneg %p89
      $region18: #{tpu_custom_call.1} parent=11 // pred_check_branch
        %137 = sbr.rel (%p135) target = $region20
      $region19: #{tpu_custom_call.1} parent=11 // pred_region
        _
      $region20: #{tpu_custom_call.1} parent=11 // pred_fallthru
        _
    $region12: #{tpu_custom_call.1} parent=5 // pred_fallthru
      _
    %p138 = scmp.lt.s32.totalorder %s9, 2
    // Predicated region
    $region21: #{tpu_custom_call.1} parent=5 // pred_check
      %p139 = pneg %p138
    $region22: #{tpu_custom_call.1} parent=5 // pred_check_branch
      %141 = sbr.rel (%p139) target = $region24
    $region23: #{tpu_custom_call.1} parent=5 // pred_region
      // Predicated region
      $region25: #{tpu_custom_call.1} parent=23 // pred_check
        %p142 = pneg %p41
      $region26: #{tpu_custom_call.1} parent=23 // pred_check_branch
        %144 = sbr.rel (%p142) target = $region28
      $region27: #{tpu_custom_call.1} parent=23 // pred_region
        %p145 = scmp.lt.s32.totalorder %s16, 1
        %s146 = scalar_select %p145, %s16, 1
        %s147 = smul.addr %s146, 4
        %s148 = smul.addr %s147, 4
        %s149 = scalar_lea.vmem %s0, %s148
      $region28: #{tpu_custom_call.1} parent=23 // pred_fallthru
        _
    $region24: #{tpu_custom_call.1} parent=5 // pred_fallthru
      _
    %p150 = scmp.le.s32.totalorder 1, %s9
    %p151 = scmp.lt.s32.totalorder %s9, 3
    %p152 = pnand %p150, %p151
    %p153 = pneg %p152
    // Predicated region
    $region29: #{tpu_custom_call.1} parent=5 // pred_check
      _
    $region30: #{tpu_custom_call.1} parent=5 // pred_check_branch
      %155 = sbr.rel (%p152) target = $region32
    $region31: #{tpu_custom_call.1} parent=5 // pred_region
      %s156 = ssub.s32 %s9, 1
      %p157 = scmp.lt.s32.totalorder %s18, 1
      %s158 = scalar_select %p157, %s18, 1
      %s159 = smul.addr %s158, 4
      %s160 = smul.addr %s159, 4
      %s161 = scalar_lea.vmem %s0, %s160
      %p162 = pneg %p47
      %p163 = pneg %p44
      %p164 = pneg %p68
      %p165 = pneg %p65
      %p166 = pneg %p89
      %p167 = pneg %p86
      %p168 = pneg %p117
      %p169 = pneg %p114
      %s170 = smul.u32 16, %s19
      %p171 = scmp.lt.s32.totalorder %s18, 1
      %s172 = scalar_select %p171, %s18, 1
      %p173 = scmp.lt.s32.totalorder %s170, 15
      %s174 = scalar_select %p173, %s170, 15
      %s175 = smul.addr %s172, 16
      %s176 = sadd.s32 %s174, %s175
      %s177 = smul.addr %s176, 8
      %s178 = scalar_lea.vmem %s3, %s177
      %p179 = scmp.lt.s32.totalorder %s18, 1
      %s180 = scalar_select %p179, %s18, 1
      %s181 = smul.addr %s180, 4
      %s182 = smul.addr %s181, 4
      %s183 = scalar_lea.vmem %s0, %s182
      %s184 = smul.u32 16, %s19
      %p185 = scmp.lt.s32.totalorder %s18, 1
      %s186 = scalar_select %p185, %s18, 1
      %p187 = scmp.lt.s32.totalorder %s184, 15
      %s188 = scalar_select %p187, %s184, 15
      %s189 = smul.addr %s186, 16
      %s190 = sadd.s32 %s188, %s189
      %s191 = smul.addr %s190, 8
      %s192 = scalar_lea.vmem %s3, %s191
      %s193 = smul.u32 16, %s19
      %s195 = smul.u32 %s19, 128
      %s196 = sshra.s32 %s195, 3
      %s197 = sand.u32 %s195, 7
      %s198 = smul.addr %s196, 4
      %s199 = scalar_lea.vmem %s1, %s198
      %v200 = vld [vmem:[%s199] sm:$0xf]
      %v201 = vld [vmem:[%s199 + $0x4] sm:$0xf]
      %v202 = vld [vmem:[%s199 + $0x8] sm:$0xf]
      %v203 = vld [vmem:[%s199 + $0xc] sm:$0xf]
      %v204 = vld [vmem:[%s199 + $0x10] sm:$0xf]
      %v205 = vld [vmem:[%s199 + $0x14] sm:$0xf]
      %v206 = vld [vmem:[%s199 + $0x18] sm:$0xf]
      %v207 = vld [vmem:[%s199 + $0x1c] sm:$0xf]
      %v208 = vld [vmem:[%s199 + $0x20] sm:$0xf]
      %v209 = vld [vmem:[%s199 + $0x24] sm:$0xf]
      %v210 = vld [vmem:[%s199 + $0x28] sm:$0xf]
      %v211 = vld [vmem:[%s199 + $0x2c] sm:$0xf]
      %v212 = vld [vmem:[%s199 + $0x30] sm:$0xf]
      %v213 = vld [vmem:[%s199 + $0x34] sm:$0xf]
      %v214 = vld [vmem:[%s199 + $0x38] sm:$0xf]
      %v215 = vld [vmem:[%s199 + $0x3c] sm:$0xf]
      %v216 = vld [vmem:[%s183] sm:$0xf]
      %v217 = vld [vmem:[%s183 + $0x8] sm:$0xf]
      %s218 = sadd.s32 %s196, 16
      %s219 = smul.addr %s218, 4
      %s220 = scalar_lea.vmem %s1, %s219
      %v221 = vld [vmem:[%s220] sm:$0xf]
      %v222 = vld [vmem:[%s220 + $0x4] sm:$0xf]
      %v223 = vld [vmem:[%s220 + $0x8] sm:$0xf]
      %v224 = vld [vmem:[%s220 + $0xc] sm:$0xf]
      %v225 = vld [vmem:[%s220 + $0x10] sm:$0xf]
      %v226 = vld [vmem:[%s220 + $0x14] sm:$0xf]
      %v227 = vld [vmem:[%s220 + $0x18] sm:$0xf]
      %v228 = vld [vmem:[%s220 + $0x1c] sm:$0xf]
      %v229 = vld [vmem:[%s220 + $0x20] sm:$0xf]
      %v230 = vld [vmem:[%s220 + $0x24] sm:$0xf]
      %v231 = vld [vmem:[%s220 + $0x28] sm:$0xf]
      %v232 = vld [vmem:[%s220 + $0x2c] sm:$0xf]
      %v233 = vld [vmem:[%s220 + $0x30] sm:$0xf]
      %v234 = vld [vmem:[%s220 + $0x34] sm:$0xf]
      %v235 = vld [vmem:[%s220 + $0x38] sm:$0xf]
      %v236 = vld [vmem:[%s220 + $0x3c] sm:$0xf]
      %v237 = vld [vmem:[%s183] sm:$0xff]
      %v238 = vld [vmem:[%s183 + $0x8] sm:$0xff]
      %v255 = vunpack.c.l.b16 %v221
      %v256 = vunpack.c.l.b16 %v222
      %v257 = vunpack.c.l.b16 %v223
      %v258 = vunpack.c.l.b16 %v224
      %v259 = vunpack.c.l.b16 %v225
      %v260 = vunpack.c.l.b16 %v226
      %v261 = vunpack.c.l.b16 %v227
      %v262 = vunpack.c.l.b16 %v228
      %v263 = vunpack.c.l.b16 %v229
      %v264 = vunpack.c.l.b16 %v230
      %v265 = vunpack.c.l.b16 %v231
      %v266 = vunpack.c.l.b16 %v232
      %v267 = vunpack.c.l.b16 %v233
      %v268 = vunpack.c.l.b16 %v234
      %v269 = vunpack.c.l.b16 %v235
      %v270 = vunpack.c.l.b16 %v236
      %v271 = vpack.c.b16 %v256, %v255
      %v272 = vpack.c.b16 %v258, %v257
      %v273 = vpack.c.b16 %v260, %v259
      %v274 = vpack.c.b16 %v262, %v261
      %v275 = vpack.c.b16 %v264, %v263
      %v276 = vpack.c.b16 %v266, %v265
      %v277 = vpack.c.b16 %v268, %v267
      %v278 = vpack.c.b16 %v270, %v269
      %v281 = vunpack.c.l.b16 %v237
      %v282 = vunpack.c.h.b16 %v237
      %v283 = vunpack.c.l.b16 %v238
      %v284 = vunpack.c.h.b16 %v238
      %v285 = vpack.c.b16 %v283, %v281
      %v286 = vpack.c.b16 %v284, %v282
      %287 = vrot.lane.b32.xlu0 %v285, 127
      %v288 = vpop.permute.xlu0 %287
      %289 = vrot.lane.b32.xlu0 %v286, 127
      %v290 = vpop.permute.xlu0 %289
      %vm291 = vcmask 1039360
      %v292 = vsel %vm291, %v288, %v290
      %vm294 = vcmask 130048
      %v296 = vsel %vm294, %v271, 0
      %v299 = vsel %vm294, %v272, 0
      %v302 = vsel %vm294, %v273, 0
      %v305 = vsel %vm294, %v274, 0
      %v308 = vsel %vm294, %v275, 0
      %v311 = vsel %vm294, %v276, 0
      %v314 = vsel %vm294, %v277, 0
      %v317 = vsel %vm294, %v278, 0
      %319 = vmatpush.bf16.msra.mxu0 0
      %320 = vmatpush.bf16.msra.mxu0 0
      %321 = vmatpush.bf16.msra.mxu0 0
      %322 = vmatpush.bf16.msra.mxu0 0
      %323 = vmatpush.bf16.msra.mxu0 0
      %324 = vmatpush.bf16.msra.mxu0 0
      %325 = vmatpush.bf16.msra.mxu0 0
      %326 = vmatpush.bf16.msra.mxu0 %v292
      %327 = vmatmul.bf16.gmra.mxu0 %v296
      %v328 = vpop.f32.mrf.mxu0
      %v329 = vadd.f32 0.0, %v328
      %v330 = vpop.f32.mrf.mxu0
      %v331 = vadd.f32 0.0, %v330
      %332 = vmatmul.bf16.gmra.mxu0 %v299
      %v333 = vpop.f32.mrf.mxu0
      %v334 = vadd.f32 0.0, %v333
      %v335 = vpop.f32.mrf.mxu0
      %v336 = vadd.f32 0.0, %v335
      %337 = vmatmul.bf16.gmra.mxu0 %v302
      %v338 = vpop.f32.mrf.mxu0
      %v339 = vadd.f32 0.0, %v338
      %v340 = vpop.f32.mrf.mxu0
      %v341 = vadd.f32 0.0, %v340
      %342 = vmatmul.bf16.gmra.mxu0 %v305
      %v343 = vpop.f32.mrf.mxu0
      %v344 = vadd.f32 0.0, %v343
      %v345 = vpop.f32.mrf.mxu0
      %v346 = vadd.f32 0.0, %v345
      %347 = vmatmul.bf16.gmra.mxu0 %v308
      %v348 = vpop.f32.mrf.mxu0
      %v349 = vadd.f32 0.0, %v348
      %v350 = vpop.f32.mrf.mxu0
      %v351 = vadd.f32 0.0, %v350
      %352 = vmatmul.bf16.gmra.mxu0 %v311
      %v353 = vpop.f32.mrf.mxu0
      %v354 = vadd.f32 0.0, %v353
      %v355 = vpop.f32.mrf.mxu0
      %v356 = vadd.f32 0.0, %v355
      %357 = vmatmul.bf16.gmra.mxu0 %v314
      %v358 = vpop.f32.mrf.mxu0
      %v359 = vadd.f32 0.0, %v358
      %v360 = vpop.f32.mrf.mxu0
      %v361 = vadd.f32 0.0, %v360
      %362 = vmatmul.bf16.gmra.mxu0 %v317
      %v363 = vpop.f32.mrf.mxu0
      %v364 = vadd.f32 0.0, %v363
      %v365 = vpop.f32.mrf.mxu0
      %v366 = vadd.f32 0.0, %v365
      %367 = vdwg.mxu0
      %v384 = vunpack.c.l.b16 %v200
      %v385 = vunpack.c.l.b16 %v201
      %v386 = vunpack.c.l.b16 %v202
      %v387 = vunpack.c.l.b16 %v203
      %v388 = vunpack.c.l.b16 %v204
      %v389 = vunpack.c.l.b16 %v205
      %v390 = vunpack.c.l.b16 %v206
      %v391 = vunpack.c.l.b16 %v207
      %v392 = vunpack.c.l.b16 %v208
      %v393 = vunpack.c.l.b16 %v209
      %v394 = vunpack.c.l.b16 %v210
      %v395 = vunpack.c.l.b16 %v211
      %v396 = vunpack.c.l.b16 %v212
      %v397 = vunpack.c.l.b16 %v213
      %v398 = vunpack.c.l.b16 %v214
      %v399 = vunpack.c.l.b16 %v215
      %v400 = vpack.c.b16 %v385, %v384
      %v401 = vpack.c.b16 %v387, %v386
      %v402 = vpack.c.b16 %v389, %v388
      %v403 = vpack.c.b16 %v391, %v390
      %v404 = vpack.c.b16 %v393, %v392
      %v405 = vpack.c.b16 %v395, %v394
      %v406 = vpack.c.b16 %v397, %v396
      %v407 = vpack.c.b16 %v399, %v398
      %v410 = vunpack.c.l.b16 %v216
      %v411 = vunpack.c.l.b16 %v217
      %v412 = vpack.c.b16 %v411, %v410
      %v415 = vsel %vm294, %v400, 0
      %v418 = vsel %vm294, %v401, 0
      %v421 = vsel %vm294, %v402, 0
      %v424 = vsel %vm294, %v403, 0
      %v427 = vsel %vm294, %v404, 0
      %v430 = vsel %vm294, %v405, 0
      %v433 = vsel %vm294, %v406, 0
      %v436 = vsel %vm294, %v407, 0
      %438 = vmatpush.bf16.msra.mxu0 0
      %439 = vmatpush.bf16.msra.mxu0 0
      %440 = vmatpush.bf16.msra.mxu0 0
      %441 = vmatpush.bf16.msra.mxu0 0
      %442 = vmatpush.bf16.msra.mxu0 0
      %443 = vmatpush.bf16.msra.mxu0 0
      %444 = vmatpush.bf16.msra.mxu0 0
      %445 = vmatpush.bf16.msra.mxu0 %v412
      %446 = vmatmul.bf16.gmra.mxu0 %v415
      %v447 = vpop.f32.mrf.mxu0
      %v448 = vadd.f32 %v329, %v447
      %v449 = vpop.f32.mrf.mxu0
      %v450 = vadd.f32 %v331, %v449
      %451 = vmatmul.bf16.gmra.mxu0 %v418
      %v452 = vpop.f32.mrf.mxu0
      %v453 = vadd.f32 %v334, %v452
      %v454 = vpop.f32.mrf.mxu0
      %v455 = vadd.f32 %v336, %v454
      %456 = vmatmul.bf16.gmra.mxu0 %v421
      %v457 = vpop.f32.mrf.mxu0
      %v458 = vadd.f32 %v339, %v457
      %v459 = vpop.f32.mrf.mxu0
      %v460 = vadd.f32 %v341, %v459
      %461 = vmatmul.bf16.gmra.mxu0 %v424
      %v462 = vpop.f32.mrf.mxu0
      %v463 = vadd.f32 %v344, %v462
      %v464 = vpop.f32.mrf.mxu0
      %v465 = vadd.f32 %v346, %v464
      %466 = vmatmul.bf16.gmra.mxu0 %v427
      %v467 = vpop.f32.mrf.mxu0
      %v468 = vadd.f32 %v349, %v467
      %v469 = vpop.f32.mrf.mxu0
      %v470 = vadd.f32 %v351, %v469
      %471 = vmatmul.bf16.gmra.mxu0 %v430
      %v472 = vpop.f32.mrf.mxu0
      %v473 = vadd.f32 %v354, %v472
      %v474 = vpop.f32.mrf.mxu0
      %v475 = vadd.f32 %v356, %v474
      %476 = vmatmul.bf16.gmra.mxu0 %v433
      %v477 = vpop.f32.mrf.mxu0
      %v478 = vadd.f32 %v359, %v477
      %v479 = vpop.f32.mrf.mxu0
      %v480 = vadd.f32 %v361, %v479
      %481 = vmatmul.bf16.gmra.mxu0 %v436
      %v482 = vpop.f32.mrf.mxu0
      %v483 = vadd.f32 %v364, %v482
      %v484 = vpop.f32.mrf.mxu0
      %v485 = vadd.f32 %v366, %v484
      %486 = vdwg.mxu0
      %s487 = sadd.s32 %s196, 32
      %s488 = smul.addr %s487, 4
      %s489 = scalar_lea.vmem %s1, %s488
      %v490 = vld [vmem:[%s489] sm:$0xf]
      %v491 = vld [vmem:[%s489 + $0x4] sm:$0xf]
      %v492 = vld [vmem:[%s489 + $0x8] sm:$0xf]
      %v493 = vld [vmem:[%s489 + $0xc] sm:$0xf]
      %v494 = vld [vmem:[%s489 + $0x10] sm:$0xf]
      %v495 = vld [vmem:[%s489 + $0x14] sm:$0xf]
      %v496 = vld [vmem:[%s489 + $0x18] sm:$0xf]
      %v497 = vld [vmem:[%s489 + $0x1c] sm:$0xf]
      %v498 = vld [vmem:[%s489 + $0x20] sm:$0xf]
      %v499 = vld [vmem:[%s489 + $0x24] sm:$0xf]
      %v500 = vld [vmem:[%s489 + $0x28] sm:$0xf]
      %v501 = vld [vmem:[%s489 + $0x2c] sm:$0xf]
      %v502 = vld [vmem:[%s489 + $0x30] sm:$0xf]
      %v503 = vld [vmem:[%s489 + $0x34] sm:$0xf]
      %v504 = vld [vmem:[%s489 + $0x38] sm:$0xf]
      %v505 = vld [vmem:[%s489 + $0x3c] sm:$0xf]
      %v522 = vunpack.c.l.b16 %v490
      %v523 = vunpack.c.l.b16 %v491
      %v524 = vunpack.c.l.b16 %v492
      %v525 = vunpack.c.l.b16 %v493
      %v526 = vunpack.c.l.b16 %v494
      %v527 = vunpack.c.l.b16 %v495
      %v528 = vunpack.c.l.b16 %v496
      %v529 = vunpack.c.l.b16 %v497
      %v530 = vunpack.c.l.b16 %v498
      %v531 = vunpack.c.l.b16 %v499
      %v532 = vunpack.c.l.b16 %v500
      %v533 = vunpack.c.l.b16 %v501
      %v534 = vunpack.c.l.b16 %v502
      %v535 = vunpack.c.l.b16 %v503
      %v536 = vunpack.c.l.b16 %v504
      %v537 = vunpack.c.l.b16 %v505
      %v538 = vpack.c.b16 %v523, %v522
      %v539 = vpack.c.b16 %v525, %v524
      %v540 = vpack.c.b16 %v527, %v526
      %v541 = vpack.c.b16 %v529, %v528
      %v542 = vpack.c.b16 %v531, %v530
      %v543 = vpack.c.b16 %v533, %v532
      %v544 = vpack.c.b16 %v535, %v534
      %v545 = vpack.c.b16 %v537, %v536
      %546 = vrot.lane.b32.xlu0 %v285, 119
      %v547 = vpop.permute.xlu0 %546
      %548 = vrot.lane.b32.xlu0 %v286, 119
      %v549 = vpop.permute.xlu0 %548
      %vm550 = vcmask 973824
      %v551 = vsel %vm550, %v547, %v549
      %v554 = vsel %vm294, %v538, 0
      %v557 = vsel %vm294, %v539, 0
      %v560 = vsel %vm294, %v540, 0
      %v563 = vsel %vm294, %v541, 0
      %v566 = vsel %vm294, %v542, 0
      %v569 = vsel %vm294, %v543, 0
      %v572 = vsel %vm294, %v544, 0
      %v575 = vsel %vm294, %v545, 0
      %577 = vmatpush.bf16.msra.mxu0 0
      %578 = vmatpush.bf16.msra.mxu0 0
      %579 = vmatpush.bf16.msra.mxu0 0
      %580 = vmatpush.bf16.msra.mxu0 0
      %581 = vmatpush.bf16.msra.mxu0 0
      %582 = vmatpush.bf16.msra.mxu0 0
      %583 = vmatpush.bf16.msra.mxu0 0
      %584 = vmatpush.bf16.msra.mxu0 %v551
      %585 = vmatmul.bf16.gmra.mxu0 %v554
      %v586 = vpop.f32.mrf.mxu0
      %v587 = vadd.f32 0.0, %v586
      %v588 = vpop.f32.mrf.mxu0
      %v589 = vadd.f32 0.0, %v588
      %590 = vmatmul.bf16.gmra.mxu0 %v557
      %v591 = vpop.f32.mrf.mxu0
      %v592 = vadd.f32 0.0, %v591
      %v593 = vpop.f32.mrf.mxu0
      %v594 = vadd.f32 0.0, %v593
      %595 = vmatmul.bf16.gmra.mxu0 %v560
      %v596 = vpop.f32.mrf.mxu0
      %v597 = vadd.f32 0.0, %v596
      %v598 = vpop.f32.mrf.mxu0
      %v599 = vadd.f32 0.0, %v598
      %600 = vmatmul.bf16.gmra.mxu0 %v563
      %v601 = vpop.f32.mrf.mxu0
      %v602 = vadd.f32 0.0, %v601
      %v603 = vpop.f32.mrf.mxu0
      %v604 = vadd.f32 0.0, %v603
      %605 = vmatmul.bf16.gmra.mxu0 %v566
      %v606 = vpop.f32.mrf.mxu0
      %v607 = vadd.f32 0.0, %v606
      %v608 = vpop.f32.mrf.mxu0
      %v609 = vadd.f32 0.0, %v608
      %610 = vmatmul.bf16.gmra.mxu0 %v569
      %v611 = vpop.f32.mrf.mxu0
      %v612 = vadd.f32 0.0, %v611
      %v613 = vpop.f32.mrf.mxu0
      %v614 = vadd.f32 0.0, %v613
      %615 = vmatmul.bf16.gmra.mxu0 %v572
      %v616 = vpop.f32.mrf.mxu0
      %v617 = vadd.f32 0.0, %v616
      %v618 = vpop.f32.mrf.mxu0
      %v619 = vadd.f32 0.0, %v618
      %620 = vmatmul.bf16.gmra.mxu0 %v575
      %v621 = vpop.f32.mrf.mxu0
      %v622 = vadd.f32 0.0, %v621
      %v623 = vpop.f32.mrf.mxu0
      %v624 = vadd.f32 0.0, %v623
      %625 = vdwg.mxu0
      %v626 = vadd.f32 %v448, %v587
      %v627 = vadd.f32 %v450, %v589
      %v628 = vadd.f32 %v453, %v592
      %v629 = vadd.f32 %v455, %v594
      %v630 = vadd.f32 %v458, %v597
      %v631 = vadd.f32 %v460, %v599
      %v632 = vadd.f32 %v463, %v602
      %v633 = vadd.f32 %v465, %v604
      %v634 = vadd.f32 %v468, %v607
      %v635 = vadd.f32 %v470, %v609
      %v636 = vadd.f32 %v473, %v612
      %v637 = vadd.f32 %v475, %v614
      %v638 = vadd.f32 %v478, %v617
      %v639 = vadd.f32 %v480, %v619
      %v640 = vadd.f32 %v483, %v622
      %v641 = vadd.f32 %v485, %v624
      %s642 = sadd.s32 %s196, 48
      %s643 = smul.addr %s642, 4
      %s644 = scalar_lea.vmem %s1, %s643
      %v645 = vld [vmem:[%s644] sm:$0xf]
      %v646 = vld [vmem:[%s644 + $0x4] sm:$0xf]
      %v647 = vld [vmem:[%s644 + $0x8] sm:$0xf]
      %v648 = vld [vmem:[%s644 + $0xc] sm:$0xf]
      %v649 = vld [vmem:[%s644 + $0x10] sm:$0xf]
      %v650 = vld [vmem:[%s644 + $0x14] sm:$0xf]
      %v651 = vld [vmem:[%s644 + $0x18] sm:$0xf]
      %v652 = vld [vmem:[%s644 + $0x1c] sm:$0xf]
      %v653 = vld [vmem:[%s644 + $0x20] sm:$0xf]
      %v654 = vld [vmem:[%s644 + $0x24] sm:$0xf]
      %v655 = vld [vmem:[%s644 + $0x28] sm:$0xf]
      %v656 = vld [vmem:[%s644 + $0x2c] sm:$0xf]
      %v657 = vld [vmem:[%s644 + $0x30] sm:$0xf]
      %v658 = vld [vmem:[%s644 + $0x34] sm:$0xf]
      %v659 = vld [vmem:[%s644 + $0x38] sm:$0xf]
      %v660 = vld [vmem:[%s644 + $0x3c] sm:$0xf]
      %v677 = vunpack.c.l.b16 %v645
      %v678 = vunpack.c.l.b16 %v646
      %v679 = vunpack.c.l.b16 %v647
      %v680 = vunpack.c.l.b16 %v648
      %v681 = vunpack.c.l.b16 %v649
      %v682 = vunpack.c.l.b16 %v650
      %v683 = vunpack.c.l.b16 %v651
      %v684 = vunpack.c.l.b16 %v652
      %v685 = vunpack.c.l.b16 %v653
      %v686 = vunpack.c.l.b16 %v654
      %v687 = vunpack.c.l.b16 %v655
      %v688 = vunpack.c.l.b16 %v656
      %v689 = vunpack.c.l.b16 %v657
      %v690 = vunpack.c.l.b16 %v658
      %v691 = vunpack.c.l.b16 %v659
      %v692 = vunpack.c.l.b16 %v660
      %v693 = vpack.c.b16 %v678, %v677
      %v694 = vpack.c.b16 %v680, %v679
      %v695 = vpack.c.b16 %v682, %v681
      %v696 = vpack.c.b16 %v684, %v683
      %v697 = vpack.c.b16 %v686, %v685
      %v698 = vpack.c.b16 %v688, %v687
      %v699 = vpack.c.b16 %v690, %v689
      %v700 = vpack.c.b16 %v692, %v691
      %701 = vrot.lane.b32.xlu0 %v285, 118
      %v702 = vpop.permute.xlu0 %701
      %703 = vrot.lane.b32.xlu0 %v286, 118
      %v704 = vpop.permute.xlu0 %703
      %vm705 = vcmask 965632
      %v706 = vsel %vm705, %v702, %v704
      %v709 = vsel %vm294, %v693, 0
      %v712 = vsel %vm294, %v694, 0
      %v715 = vsel %vm294, %v695, 0
      %v718 = vsel %vm294, %v696, 0
      %v721 = vsel %vm294, %v697, 0
      %v724 = vsel %vm294, %v698, 0
      %v727 = vsel %vm294, %v699, 0
      %v730 = vsel %vm294, %v700, 0
      %732 = vmatpush.bf16.msra.mxu0 0
      %733 = vmatpush.bf16.msra.mxu0 0
      %734 = vmatpush.bf16.msra.mxu0 0
      %735 = vmatpush.bf16.msra.mxu0 0
      %736 = vmatpush.bf16.msra.mxu0 0
      %737 = vmatpush.bf16.msra.mxu0 0
      %738 = vmatpush.bf16.msra.mxu0 0
      %739 = vmatpush.bf16.msra.mxu0 %v706
      %740 = vmatmul.bf16.gmra.mxu0 %v709
      %v741 = vpop.f32.mrf.mxu0
      %v742 = vadd.f32 0.0, %v741
      %v743 = vpop.f32.mrf.mxu0
      %v744 = vadd.f32 0.0, %v743
      %745 = vmatmul.bf16.gmra.mxu0 %v712
      %v746 = vpop.f32.mrf.mxu0
      %v747 = vadd.f32 0.0, %v746
      %v748 = vpop.f32.mrf.mxu0
      %v749 = vadd.f32 0.0, %v748
      %750 = vmatmul.bf16.gmra.mxu0 %v715
      %v751 = vpop.f32.mrf.mxu0
      %v752 = vadd.f32 0.0, %v751
      %v753 = vpop.f32.mrf.mxu0
      %v754 = vadd.f32 0.0, %v753
      %755 = vmatmul.bf16.gmra.mxu0 %v718
      %v756 = vpop.f32.mrf.mxu0
      %v757 = vadd.f32 0.0, %v756
      %v758 = vpop.f32.mrf.mxu0
      %v759 = vadd.f32 0.0, %v758
      %760 = vmatmul.bf16.gmra.mxu0 %v721
      %v761 = vpop.f32.mrf.mxu0
      %v762 = vadd.f32 0.0, %v761
      %v763 = vpop.f32.mrf.mxu0
      %v764 = vadd.f32 0.0, %v763
      %765 = vmatmul.bf16.gmra.mxu0 %v724
      %v766 = vpop.f32.mrf.mxu0
      %v767 = vadd.f32 0.0, %v766
      %v768 = vpop.f32.mrf.mxu0
      %v769 = vadd.f32 0.0, %v768
      %770 = vmatmul.bf16.gmra.mxu0 %v727
      %v771 = vpop.f32.mrf.mxu0
      %v772 = vadd.f32 0.0, %v771
      %v773 = vpop.f32.mrf.mxu0
      %v774 = vadd.f32 0.0, %v773
      %775 = vmatmul.bf16.gmra.mxu0 %v730
      %v776 = vpop.f32.mrf.mxu0
      %v777 = vadd.f32 0.0, %v776
      %v778 = vpop.f32.mrf.mxu0
      %v779 = vadd.f32 0.0, %v778
      %780 = vdwg.mxu0
      %v781 = vadd.f32 %v626, %v742
      %v782 = vadd.f32 %v627, %v744
      %v783 = vadd.f32 %v628, %v747
      %v784 = vadd.f32 %v629, %v749
      %v785 = vadd.f32 %v630, %v752
      %v786 = vadd.f32 %v631, %v754
      %v787 = vadd.f32 %v632, %v757
      %v788 = vadd.f32 %v633, %v759
      %v789 = vadd.f32 %v634, %v762
      %v790 = vadd.f32 %v635, %v764
      %v791 = vadd.f32 %v636, %v767
      %v792 = vadd.f32 %v637, %v769
      %v793 = vadd.f32 %v638, %v772
      %v794 = vadd.f32 %v639, %v774
      %v795 = vadd.f32 %v640, %v777
      %v796 = vadd.f32 %v641, %v779
      %v797 = vld [vmem:[%s2] sm:$0x1]
      %v799 = vperm.slane %v797, 0
      %v801 = vmul.f32 %v781, %v799
      %v802 = vmul.f32 %v782, %v799
      %v803 = vmul.f32 %v783, %v799
      %v804 = vmul.f32 %v784, %v799
      %v805 = vmul.f32 %v785, %v799
      %v806 = vmul.f32 %v786, %v799
      %v807 = vmul.f32 %v787, %v799
      %v808 = vmul.f32 %v788, %v799
      %v809 = vmul.f32 %v789, %v799
      %v810 = vmul.f32 %v790, %v799
      %v811 = vmul.f32 %v791, %v799
      %v812 = vmul.f32 %v792, %v799
      %v813 = vmul.f32 %v793, %v799
      %v814 = vmul.f32 %v794, %v799
      %v815 = vmul.f32 %v795, %v799
      %v816 = vmul.f32 %v796, %v799
      %817 = vadd.xlane.f32.xlu0 %v801
      %v818 = vpop.xlane.xlu0 %817
      %819 = vadd.xlane.f32.xlu0 %v802
      %v820 = vpop.xlane.xlu0 %819
      %821 = vadd.xlane.f32.xlu0 %v803
      %v822 = vpop.xlane.xlu0 %821
      %823 = vadd.xlane.f32.xlu0 %v804
      %v824 = vpop.xlane.xlu0 %823
      %825 = vadd.xlane.f32.xlu0 %v805
      %v826 = vpop.xlane.xlu0 %825
      %827 = vadd.xlane.f32.xlu0 %v806
      %v828 = vpop.xlane.xlu0 %827
      %829 = vadd.xlane.f32.xlu0 %v807
      %v830 = vpop.xlane.xlu0 %829
      %831 = vadd.xlane.f32.xlu0 %v808
      %v832 = vpop.xlane.xlu0 %831
      %833 = vadd.xlane.f32.xlu0 %v809
      %v834 = vpop.xlane.xlu0 %833
      %835 = vadd.xlane.f32.xlu0 %v810
      %v836 = vpop.xlane.xlu0 %835
      %837 = vadd.xlane.f32.xlu0 %v811
      %v838 = vpop.xlane.xlu0 %837
      %839 = vadd.xlane.f32.xlu0 %v812
      %v840 = vpop.xlane.xlu0 %839
      %841 = vadd.xlane.f32.xlu0 %v813
      %v842 = vpop.xlane.xlu0 %841
      %843 = vadd.xlane.f32.xlu0 %v814
      %v844 = vpop.xlane.xlu0 %843
      %845 = vadd.xlane.f32.xlu0 %v815
      %v846 = vpop.xlane.xlu0 %845
      %847 = vadd.xlane.f32.xlu0 %v816
      %v848 = vpop.xlane.xlu0 %847
      %vm849 = vcmask 7168
      %850 = vst.msk [vmem:[%s192] sm:$0xff] %vm849, %v818
      %851 = vst.msk [vmem:[%s192 + $0x8] sm:$0xff] %vm849, %v820
      %852 = vst.msk [vmem:[%s192 + $0x10] sm:$0xff] %vm849, %v822
      %853 = vst.msk [vmem:[%s192 + $0x18] sm:$0xff] %vm849, %v824
      %854 = vst.msk [vmem:[%s192 + $0x20] sm:$0xff] %vm849, %v826
      %855 = vst.msk [vmem:[%s192 + $0x28] sm:$0xff] %vm849, %v828
      %856 = vst.msk [vmem:[%s192 + $0x30] sm:$0xff] %vm849, %v830
      %857 = vst.msk [vmem:[%s192 + $0x38] sm:$0xff] %vm849, %v832
      %858 = vst.msk [vmem:[%s192 + $0x40] sm:$0xff] %vm849, %v834
      %859 = vst.msk [vmem:[%s192 + $0x48] sm:$0xff] %vm849, %v836
      %860 = vst.msk [vmem:[%s192 + $0x50] sm:$0xff] %vm849, %v838
      %861 = vst.msk [vmem:[%s192 + $0x58] sm:$0xff] %vm849, %v840
      %862 = vst.msk [vmem:[%s192 + $0x60] sm:$0xff] %vm849, %v842
      %863 = vst.msk [vmem:[%s192 + $0x68] sm:$0xff] %vm849, %v844
      %864 = vst.msk [vmem:[%s192 + $0x70] sm:$0xff] %vm849, %v846
      %865 = vst.msk [vmem:[%s192 + $0x78] sm:$0xff] %vm849, %v848
      %v866 = vmul.f32 %v801, %v801
      %v867 = vmul.f32 %v802, %v802
      %v868 = vmul.f32 %v803, %v803
      %v869 = vmul.f32 %v804, %v804
      %v870 = vmul.f32 %v805, %v805
      %v871 = vmul.f32 %v806, %v806
      %v872 = vmul.f32 %v807, %v807
      %v873 = vmul.f32 %v808, %v808
      %v874 = vmul.f32 %v809, %v809
      %v875 = vmul.f32 %v810, %v810
      %v876 = vmul.f32 %v811, %v811
      %v877 = vmul.f32 %v812, %v812
      %v878 = vmul.f32 %v813, %v813
      %v879 = vmul.f32 %v814, %v814
      %v880 = vmul.f32 %v815, %v815
      %v881 = vmul.f32 %v816, %v816
      %882 = vadd.xlane.f32.xlu0 %v866
      %v883 = vpop.xlane.xlu0 %882
      %884 = vadd.xlane.f32.xlu0 %v867
      %v885 = vpop.xlane.xlu0 %884
      %886 = vadd.xlane.f32.xlu0 %v868
      %v887 = vpop.xlane.xlu0 %886
      %888 = vadd.xlane.f32.xlu0 %v869
      %v889 = vpop.xlane.xlu0 %888
      %890 = vadd.xlane.f32.xlu0 %v870
      %v891 = vpop.xlane.xlu0 %890
      %892 = vadd.xlane.f32.xlu0 %v871
      %v893 = vpop.xlane.xlu0 %892
      %894 = vadd.xlane.f32.xlu0 %v872
      %v895 = vpop.xlane.xlu0 %894
      %896 = vadd.xlane.f32.xlu0 %v873
      %v897 = vpop.xlane.xlu0 %896
      %898 = vadd.xlane.f32.xlu0 %v874
      %v899 = vpop.xlane.xlu0 %898
      %900 = vadd.xlane.f32.xlu0 %v875
      %v901 = vpop.xlane.xlu0 %900
      %902 = vadd.xlane.f32.xlu0 %v876
      %v903 = vpop.xlane.xlu0 %902
      %904 = vadd.xlane.f32.xlu0 %v877
      %v905 = vpop.xlane.xlu0 %904
      %906 = vadd.xlane.f32.xlu0 %v878
      %v907 = vpop.xlane.xlu0 %906
      %908 = vadd.xlane.f32.xlu0 %v879
      %v909 = vpop.xlane.xlu0 %908
      %910 = vadd.xlane.f32.xlu0 %v880
      %v911 = vpop.xlane.xlu0 %910
      %912 = vadd.xlane.f32.xlu0 %v881
      %v913 = vpop.xlane.xlu0 %912
      %vm914 = vcmask 15368
      %915 = vst.msk [vmem:[%s192] sm:$0xff] %vm914, %v883
      %916 = vst.msk [vmem:[%s192 + $0x8] sm:$0xff] %vm914, %v885
      %917 = vst.msk [vmem:[%s192 + $0x10] sm:$0xff] %vm914, %v887
      %918 = vst.msk [vmem:[%s192 + $0x18] sm:$0xff] %vm914, %v889
      %919 = vst.msk [vmem:[%s192 + $0x20] sm:$0xff] %vm914, %v891
      %920 = vst.msk [vmem:[%s192 + $0x28] sm:$0xff] %vm914, %v893
      %921 = vst.msk [vmem:[%s192 + $0x30] sm:$0xff] %vm914, %v895
      %922 = vst.msk [vmem:[%s192 + $0x38] sm:$0xff] %vm914, %v897
      %923 = vst.msk [vmem:[%s192 + $0x40] sm:$0xff] %vm914, %v899
      %924 = vst.msk [vmem:[%s192 + $0x48] sm:$0xff] %vm914, %v901
      %925 = vst.msk [vmem:[%s192 + $0x50] sm:$0xff] %vm914, %v903
      %926 = vst.msk [vmem:[%s192 + $0x58] sm:$0xff] %vm914, %v905
      %927 = vst.msk [vmem:[%s192 + $0x60] sm:$0xff] %vm914, %v907
      %928 = vst.msk [vmem:[%s192 + $0x68] sm:$0xff] %vm914, %v909
      %929 = vst.msk [vmem:[%s192 + $0x70] sm:$0xff] %vm914, %v911
      %930 = vst.msk [vmem:[%s192 + $0x78] sm:$0xff] %vm914, %v913
      %s931 = smul.u32 16, %s19
      %p932 = scmp.lt.s32.totalorder %s18, 1
      %s933 = scalar_select %p932, %s18, 1
      %p934 = scmp.lt.s32.totalorder %s931, 15
      %s935 = scalar_select %p934, %s931, 15
      %s936 = smul.addr %s933, 16
      %s937 = sadd.s32 %s935, %s936
      %s938 = smul.addr %s937, 8
      %s939 = scalar_lea.vmem %s3, %s938
      // Predicated region
      $region33: #{tpu_custom_call.1} parent=31 // pred_check
        %p940 = pneg %p114
      $region34: #{tpu_custom_call.1} parent=31 // pred_check_branch
        %942 = sbr.rel (%p940) target = $region36
      $region35: #{tpu_custom_call.1} parent=31 // pred_region
        %s943 = smul.u32 16, %s19
      $region36: #{tpu_custom_call.1} parent=31 // pred_fallthru
        _
    $region32: #{tpu_custom_call.1} parent=5 // pred_fallthru
      _
    %p944 = scmp.le.s32.totalorder 2, %s9
    // Predicated region
    $region37: #{tpu_custom_call.1} parent=5 // pred_check
      %p945 = pneg %p944
    $region38: #{tpu_custom_call.1} parent=5 // pred_check_branch
      %947 = sbr.rel (%p945) target = $region40
    $region39: #{tpu_custom_call.1} parent=5 // pred_region
      %s948 = ssub.s32 %s9, 2
      // Predicated region
      $region41: #{tpu_custom_call.1} parent=39 // pred_check
        %p949 = pneg %p120
      $region42: #{tpu_custom_call.1} parent=39 // pred_check_branch
        %951 = sbr.rel (%p949) target = $region44
      $region43: #{tpu_custom_call.1} parent=39 // pred_region
        %s952 = smul.u32 16, %s21
        %p953 = scmp.lt.s32.totalorder %s20, 1
        %s954 = scalar_select %p953, %s20, 1
        %p955 = scmp.lt.s32.totalorder %s952, 15
        %s956 = scalar_select %p955, %s952, 15
        %s957 = smul.addr %s954, 16
        %s958 = sadd.s32 %s956, %s957
        %s959 = smul.addr %s958, 8
        %s960 = scalar_lea.vmem %s3, %s959
      $region44: #{tpu_custom_call.1} parent=39 // pred_fallthru
        _
    $region40: #{tpu_custom_call.1} parent=5 // pred_fallthru
      _
  $region6: #{tpu_custom_call.1} parent=0 // loop_footer
    %s13 = sadd.s32 1, %s9
  $region7: #{tpu_custom_call.1} parent=0 // loop_footer_branch
    %8 = sbr.rel target = $region3
  $region8: #{tpu_custom_call.1} parent=0 // loop_exit
    _

</llo_original>
